<compile_context>
chip_gen: v6e
topology: v6e:2x2x1
jax: 0.10.0
libtpu: 0.0.40
codegen_flags: <defaults>
</compile_context>

<pallas_src>
from typing import List, Tuple

import jax
import jax.numpy as jnp
from jax import lax
from jax.experimental import pallas as pl
from jax.experimental.pallas import tpu as pltpu


# ---------------------------------------------------------------------------
# Kernel 1: fused gating (matmul + softmax) + top-k selection.
# ---------------------------------------------------------------------------
def _make_gating_topk_kernel(top_k: int):
    def kernel(q_ref, k_ref, w_ref, idx_ref):
        # Contract the last dims of both operands: no (E, H) transpose through
        # the XLU ahead of the MXU push.
        logits = lax.dot_general(
            q_ref[...],
            k_ref[...],
            dimension_numbers=(((1,), (1,)), ((), ())),
            preferred_element_type=jnp.float32,
        )  # (L, E)

        m = jnp.max(logits, axis=-1, keepdims=True)
        e = jnp.exp(logits - m)
        denom = jnp.sum(e, axis=-1, keepdims=True)
        # EUP reciprocal: separate VLIW slot, softmax tolerates the approximation
        # (same per-row scale, so top-k ordering is exact).
        scores = e * pl.reciprocal(denom, approx=True)  # (L, E)

        L, E = scores.shape
        col_ids = lax.broadcasted_iota(jnp.int32, (L, E), 1)
        work = scores
        vals, idxs = [], []
        for _ in range(top_k):  # static unroll, k is tiny
            best = jnp.max(work, axis=-1, keepdims=True)            # (L, 1)
            cand = jnp.where(work == best, col_ids, E)               # ties -> lowest id
            bidx = jnp.min(cand, axis=-1, keepdims=True)             # (L, 1) int32
            vals.append(best)
            idxs.append(bidx)
            work = jnp.where(col_ids == bidx, -jnp.inf, work)
        w_ref[...] = jnp.concatenate(vals, axis=-1)
        idx_ref[...] = jnp.concatenate(idxs, axis=-1)

    return kernel


def gating_topk(queries: jax.Array, keys: jax.Array, top_k: int):
    L, H = queries.shape
    E, _ = keys.shape
    return pl.pallas_call(
        _make_gating_topk_kernel(top_k),
        out_shape=(
            jax.ShapeDtypeStruct((L, top_k), jnp.float32),   # gate weights
            jax.ShapeDtypeStruct((L, top_k), jnp.int32),     # selected expert ids
        ),
        in_specs=[
            pl.BlockSpec((L, H), lambda: (0, 0)),
            pl.BlockSpec((E, H), lambda: (0, 0)),
        ],
        out_specs=(
            pl.BlockSpec((L, top_k), lambda: (0, 0)),
            pl.BlockSpec((L, top_k), lambda: (0, 0)),
        ),
    )(queries, keys)


# ---------------------------------------------------------------------------
# Kernel 2: prefetch (gather) of the selected expert weight shards.
# Direct HBM->HBM DMAs (both operands memory_space=pl.ANY), expert ids arrive
# in SMEM via scalar prefetch, and a small ring of DMA semaphores keeps several
# shard copies in flight.  No VMEM staging -> scales to production H on all
# generations without re-deriving tile sizes or raising vmem_limit_bytes.
# ---------------------------------------------------------------------------
_N_DMA_SEM = 4  # in-flight HBM->HBM shard copies


def _make_prefetch_kernel(n_sel: int, nsem: int):
    def kernel(idx_ref, w_hbm, o_hbm, sem):
        # idx_ref: (n_sel,) int32 in SMEM (scalar-prefetched expert ids)
        # w_hbm:   (E, H, H) raw HBM ref
        # o_hbm:   (n_sel, H, H) raw HBM ref (output)
        def copy(i, slot):
            return pltpu.make_async_copy(
                w_hbm.at[idx_ref[i]], o_hbm.at[i], sem.at[slot]
            )

        # prime the ring
        @pl.loop(0, nsem)
        def _(i):
            copy(i, i).start()

        # steady state: retire the oldest copy, reissue on the freed slot
        if n_sel > nsem:
            @pl.loop(nsem, n_sel)
            def _(i):
                slot = i % nsem
                copy(i - nsem, slot).wait()
                copy(i, slot).start()

        # drain the last nsem copies
        @pl.loop(n_sel - nsem, n_sel)
        def _(i):
            copy(i, i % nsem).wait()

    return kernel


def prefetch_shards(expert_weights: jax.Array, flat_idx: jax.Array) -> jax.Array:
    # expert_weights: (E, H, H); flat_idx: (L*k,) int32 expert ids
    E, H, _ = expert_weights.shape
    n_sel = int(flat_idx.shape[0])
    nsem = min(_N_DMA_SEM, n_sel)
    grid_spec = pltpu.PrefetchScalarGridSpec(
        num_scalar_prefetch=1,
        grid=(1,),
        in_specs=[pl.BlockSpec(memory_space=pl.ANY)],    # weights stay in HBM
        out_specs=pl.BlockSpec(memory_space=pl.ANY),     # output written in HBM by DMA
        scratch_shapes=[pltpu.SemaphoreType.DMA((nsem,))],
    )
    # TODO(synk): on v7x, split the copy loop across both TensorCores (leading
    # grid axis of size 2, "parallel") to use both DMA issue paths.
    return pl.pallas_call(
        _make_prefetch_kernel(n_sel, nsem),
        out_shape=jax.ShapeDtypeStruct((n_sel, H, H), expert_weights.dtype),
        grid_spec=grid_spec,
        compiler_params=pltpu.CompilerParams(
            dimension_semantics=("arbitrary",),
        ),
    )(flat_idx, expert_weights)


# ---------------------------------------------------------------------------
# CortexCoordinator: parameters + forward()
# ---------------------------------------------------------------------------
class CortexCoordinatorPallas:
    def __init__(self, num_layers: int, num_experts: int, hidden: int, top_k: int, key):
        k1, k2, k3 = jax.random.split(key, 3)
        self.num_layers = num_layers
        self.num_experts = num_experts
        self.hidden = hidden
        self.top_k = top_k
        # shard ensemble: one weight shard per expert.
        # (bf16 storage would halve gather HBM traffic; kept f32 for spec fidelity.)
        self.expert_weights = jax.random.normal(
            k1, (num_experts, hidden, hidden), jnp.float32
        ) * 0.02
        # shard prefetcher state: per-layer query embeddings and expert keys
        self.layer_queries = jax.random.normal(k2, (num_layers, hidden), jnp.float32)
        self.expert_keys = jax.random.normal(k3, (num_experts, hidden), jnp.float32)

    def __call__(self) -> List[Tuple[jax.Array, jax.Array]]:
        """Returns the prefetched subset: one (shards, gate_weights) per layer."""
        gate_w, gate_idx = gating_topk(
            self.layer_queries, self.expert_keys, self.top_k
        )  # (L, k) f32, (L, k) i32
        flat_idx = gate_idx.reshape(-1)                               # (L*k,)
        # TODO(synk): duplicate expert selections re-copy the same shard; a
        # dedup pass (or handing (expert_weights, gate_idx) straight to the
        # CortexMoE layers) would cut HBM traffic further.
        flat_shards = prefetch_shards(self.expert_weights, flat_idx)  # (L*k, H, H)
        shards = flat_shards.reshape(
            self.num_layers, self.top_k, self.hidden, self.hidden
        )
        # List[Prefetch]: one entry per CortexMoE layer
        return [(shards[l], gate_w[l]) for l in range(self.num_layers)]

    # TODO(synk): finalize()/LocalizedPrefetcher mode switch is host-side
    # control flow with no kernel equivalent; not implemented here.


if __name__ == "__main__":
    key = jax.random.PRNGKey(0)
    coordinator = CortexCoordinatorPallas(
        num_layers=4, num_experts=8, hidden=32, top_k=2, key=key
    )

    prefetch = coordinator()
    for shards_l, gates_l in prefetch:
        jax.block_until_ready(shards_l)
        jax.block_until_ready(gates_l)

    # sanity: gathered shards must match a plain-JAX gather of the same indices
    scores_ref = jax.nn.softmax(
        coordinator.layer_queries @ coordinator.expert_keys.T, axis=-1
    )
    gw_ref, gi_ref = jax.lax.top_k(scores_ref, coordinator.top_k)
    shards_ref = coordinator.expert_weights[gi_ref]  # (L, k, H, H)
    got_shards = jnp.stack([p[0] for p in prefetch])
    got_gates = jnp.stack([p[1] for p in prefetch])
    assert jnp.allclose(got_shards, shards_ref, atol=1e-6), "shard prefetch mismatch"
    # gate weights use the EUP approximate reciprocal -> slightly looser tolerance
    assert jnp.allclose(got_gates, gw_ref, atol=5e-3, rtol=5e-3), "gate weight mismatch"

    print("KERNEL_OK")
</pallas_src>

<mosaic_0001>
module attributes {stable_mosaic.version = 11 : i64} {
  func.func @kernel(%arg0: memref<4x32xf32, #tpu.memory_space<vmem>>, %arg1: memref<8x32xf32, #tpu.memory_space<vmem>>, %arg2: memref<4x2xf32, #tpu.memory_space<vmem>>, %arg3: memref<4x2xi32, #tpu.memory_space<vmem>>) attributes {dimension_semantics = [], scalar_prefetch = 0 : i64, scratch_operands = 0 : i64, tpu.core_type = #tpu.core_type<tc>} {
    %c0 = arith.constant 0 : index
    %c0_0 = arith.constant 0 : index
    %0 = vector.load %arg0[%c0, %c0_0] : memref<4x32xf32, #tpu.memory_space<vmem>>, vector<4x32xf32>
    %c0_1 = arith.constant 0 : index
    %c0_2 = arith.constant 0 : index
    %1 = vector.load %arg1[%c0_1, %c0_2] : memref<8x32xf32, #tpu.memory_space<vmem>>, vector<8x32xf32>
    %cst = arith.constant dense<0.000000e+00> : vector<4x8xf32>
    %2 = tpu.matmul %0, %1, %cst {dimension_numbers = #tpu.dot_dimension_numbers<[1], [1], [0], [0], [0, 0, 1, 0], [], []>} : vector<4x32xf32>, vector<8x32xf32>, vector<4x8xf32> -> vector<4x8xf32>
    %cst_3 = arith.constant dense<0xFF800000> : vector<4xf32>
    %3 = vector.multi_reduction <maximumf>, %2, %cst_3 [1] : vector<4x8xf32> to vector<4xf32>
    %4 = vector.shape_cast %3 : vector<4xf32> to vector<4x1xf32>
    %5 = vector.broadcast %4 : vector<4x1xf32> to vector<4x8xf32>
    %6 = arith.subf %2, %5 : vector<4x8xf32>
    %7 = math.exp %6 : vector<4x8xf32>
    %cst_4 = arith.constant dense<0.000000e+00> : vector<4xf32>
    %8 = vector.multi_reduction <add>, %7, %cst_4 [1] : vector<4x8xf32> to vector<4xf32>
    %9 = vector.shape_cast %8 : vector<4xf32> to vector<4x1xf32>
    %10 = tpu.reciprocal %9 {approx = true} : vector<4x1xf32> -> vector<4x1xf32>
    %11 = vector.broadcast %10 : vector<4x1xf32> to vector<4x8xf32>
    %12 = arith.mulf %7, %11 : vector<4x8xf32>
    %13 = tpu.iota {dimensions = array<i32: 1>} : vector<4x8xi32>
    %cst_5 = arith.constant dense<0xFF800000> : vector<4xf32>
    %14 = vector.multi_reduction <maximumf>, %12, %cst_5 [1] : vector<4x8xf32> to vector<4xf32>
    %15 = vector.shape_cast %14 : vector<4xf32> to vector<4x1xf32>
    %16 = vector.broadcast %15 : vector<4x1xf32> to vector<4x8xf32>
    %17 = arith.cmpf oeq, %12, %16 : vector<4x8xf32>
    %c8_i32 = arith.constant 8 : i32
    %18 = vector.broadcast %c8_i32 : i32 to vector<4x8xi32>
    %19 = arith.select %17, %13, %18 : vector<4x8xi1>, vector<4x8xi32>
    %cst_6 = arith.constant dense<2147483647> : vector<4xi32>
    %20 = vector.multi_reduction <minsi>, %19, %cst_6 [1] : vector<4x8xi32> to vector<4xi32>
    %21 = vector.shape_cast %20 : vector<4xi32> to vector<4x1xi32>
    %22 = vector.broadcast %21 : vector<4x1xi32> to vector<4x8xi32>
    %23 = arith.cmpi eq, %13, %22 : vector<4x8xi32>
    %cst_7 = arith.constant 0xFF800000 : f32
    %24 = vector.broadcast %cst_7 : f32 to vector<4x8xf32>
    %25 = arith.select %23, %24, %12 : vector<4x8xi1>, vector<4x8xf32>
    %cst_8 = arith.constant dense<0xFF800000> : vector<4xf32>
    %26 = vector.multi_reduction <maximumf>, %25, %cst_8 [1] : vector<4x8xf32> to vector<4xf32>
    %27 = vector.shape_cast %26 : vector<4xf32> to vector<4x1xf32>
    %28 = vector.broadcast %27 : vector<4x1xf32> to vector<4x8xf32>
    %29 = arith.cmpf oeq, %25, %28 : vector<4x8xf32>
    %c8_i32_9 = arith.constant 8 : i32
    %30 = vector.broadcast %c8_i32_9 : i32 to vector<4x8xi32>
    %31 = arith.select %29, %13, %30 : vector<4x8xi1>, vector<4x8xi32>
    %cst_10 = arith.constant dense<2147483647> : vector<4xi32>
    %32 = vector.multi_reduction <minsi>, %31, %cst_10 [1] : vector<4x8xi32> to vector<4xi32>
    %33 = vector.shape_cast %32 : vector<4xi32> to vector<4x1xi32>
    %34 = tpu.concatenate %15, %27 in 1 : vector<4x1xf32>, vector<4x1xf32> -> vector<4x2xf32>
    %c0_11 = arith.constant 0 : index
    %c0_12 = arith.constant 0 : index
    %35 = vector.load %arg2[%c0_11, %c0_12] : memref<4x2xf32, #tpu.memory_space<vmem>>, vector<4x2xf32>
    tpu.vector_store %arg2[%c0_11, %c0_12], %34 {strides = array<i32>} : memref<4x2xf32, #tpu.memory_space<vmem>>, vector<4x2xf32>,
    %36 = tpu.concatenate %21, %33 in 1 : vector<4x1xi32>, vector<4x1xi32> -> vector<4x2xi32>
    %c0_13 = arith.constant 0 : index
    %c0_14 = arith.constant 0 : index
    %37 = vector.load %arg3[%c0_13, %c0_14] : memref<4x2xi32, #tpu.memory_space<vmem>>, vector<4x2xi32>
    tpu.vector_store %arg3[%c0_13, %c0_14], %36 {strides = array<i32>} : memref<4x2xi32, #tpu.memory_space<vmem>>, vector<4x2xi32>,
    return
  }
}

</mosaic_0001>

<llo_original>
// kernel: tpu_custom_call.1
$region0: #{tpu_custom_call.1}
  #allocation0 [shape = 'u32[]', space=smem, size = 0x4, offset = 0x4, fixed_abs, tag = 'smem constant byte address 0x4 - core index']
  #allocation1 [shape = 'u32[144,128]{1,0:T(1,128)}', space=vmem, size = 0x12000, scoped, tag = 'internal scratch']
  %s0 = inlined_call_operand.hbm [shape: f32[4,32], index: 0, kind: input, shape index: {}]
  %s1 = inlined_call_operand.hbm [shape: f32[8,32], index: 1, kind: input, shape index: {}]
  %s2 = inlined_call_operand.vmem [shape: f32[4,2], index: 2, kind: output, shape index: {0}]
  %s3 = inlined_call_operand.vmem [shape: s32[4,2], index: 3, kind: output, shape index: {1}]
  %4 = xla_tuple %s2, %s3
  %s5 = sld [smem:[#allocation0]]
  $region34: #{tpu_custom_call.1} parent=0
    _
  %s7 = ssub.s32 1, %s5
  %s8 = scalar_select 0, %s7, %s5
  $region1: #{tpu_custom_call.1} parent=0
    #allocation2 [shape = 'u8[2048]{0}', space=vmem, size = 0x800, scoped, tag = 'input window, operand 0, single buffered']
    #allocation3 [shape = 's32[1]{0}', space=sflag, size = 0x4, scoped, tag = 'scoped memory for tpu_custom_call.1']
    #allocation4 [shape = 'u8[4096]{0}', space=vmem, size = 0x1000, scoped, tag = 'input window, operand 1, single buffered']
    #allocation5 [shape = 's32[1]{0}', space=sflag, size = 0x4, scoped, tag = 'scoped memory for tpu_custom_call.1']
    %9 = vsyncpa [#allocation3], 0
    %10 = vsyncpa [#allocation5], 0
    // Predicated region
    $region2: #{tpu_custom_call.1} parent=1 // pred_check
      _
    $region3: #{tpu_custom_call.1} parent=1 // pred_check_branch
      %12 = sbr.rel (0) target = $region5
    $region4: #{tpu_custom_call.1} parent=1 // pred_region
      %s14 = ssub.s32 64, 64
      %15 = vsyncadd [#allocation3], %s14
      %s17 = sshll.u32 [#allocation2], 4
      %s18 = int_to_ptr.vmem [resolvable:$true] %s17
      %20 = dma.hbm_to_vmem [thread:$0]  %s0, 64, %s18, [#allocation3]
    $region5: #{tpu_custom_call.1} parent=1 // pred_fallthru
      _
    // Predicated region
    $region6: #{tpu_custom_call.1} parent=1 // pred_check
      _
    $region7: #{tpu_custom_call.1} parent=1 // pred_check_branch
      %22 = sbr.rel (0) target = $region9
    $region8: #{tpu_custom_call.1} parent=1 // pred_region
      %s24 = ssub.s32 128, 128
      %25 = vsyncadd [#allocation5], %s24
      %s27 = sshll.u32 [#allocation4], 4
      %s28 = int_to_ptr.vmem [resolvable:$true] %s27
      %30 = dma.hbm_to_vmem [thread:$0]  %s1, 128, %s28, [#allocation5]
    $region9: #{tpu_custom_call.1} parent=1 // pred_fallthru
      _
    // Predicated region
    $region10: #{tpu_custom_call.1} parent=1 // pred_check
      _
    $region11: #{tpu_custom_call.1} parent=1 // pred_check_branch
      %32 = sbr.rel (0) target = $region13
    $region12: #{tpu_custom_call.1} parent=1 // pred_region
      %33 = dma.done [#allocation3], 64
    $region13: #{tpu_custom_call.1} parent=1 // pred_fallthru
      _
    // Predicated region
    $region14: #{tpu_custom_call.1} parent=1 // pred_check
      _
    $region15: #{tpu_custom_call.1} parent=1 // pred_check_branch
      %35 = sbr.rel (0) target = $region17
    $region16: #{tpu_custom_call.1} parent=1 // pred_region
      %36 = dma.done [#allocation5], 128
    $region17: #{tpu_custom_call.1} parent=1 // pred_fallthru
      _
    %v37 = vld [vmem:[#allocation2] sm:$0xf]
    %v38 = vld [vmem:[#allocation4] sm:$0xff]
    %vm39 = vcmask 261120
    %v41 = vsel %vm39, %v37, 0
    %v44 = vsel %vm39, %v38, 0
    %46 = vmatprep.subr.mxu0 0.0
    %47 = vmatpush1.xpose.msra.mxu0 0.0
    %48 = vmatprep.subr.mxu0 0.0
    %49 = vmatpush1.xpose.msra.mxu0 0.0
    %50 = vmatprep.subr.mxu0 0.0
    %51 = vmatpush1.xpose.msra.mxu0 0.0
    %52 = vmatprep.subr.mxu0 0.0
    %53 = vmatpush1.xpose.msra.mxu0 0.0
    %54 = vmatprep.subr.mxu0 0.0
    %55 = vmatpush1.xpose.msra.mxu0 0.0
    %56 = vmatprep.subr.mxu0 0.0
    %57 = vmatpush1.xpose.msra.mxu0 0.0
    %58 = vmatprep.subr.mxu0 0.0
    %59 = vmatpush1.xpose.msra.mxu0 0.0
    %60 = vmatprep.subr.mxu0 0.0
    %61 = vmatpush1.xpose.msra.mxu0 0.0
    %62 = vmatprep.subr.mxu0 0.0
    %63 = vmatpush1.xpose.msra.mxu0 0.0
    %64 = vmatprep.subr.mxu0 0.0
    %65 = vmatpush1.xpose.msra.mxu0 0.0
    %66 = vmatprep.subr.mxu0 0.0
    %67 = vmatpush1.xpose.msra.mxu0 0.0
    %68 = vmatprep.subr.mxu0 0.0
    %69 = vmatpush1.xpose.msra.mxu0 0.0
    %70 = vmatprep.subr.mxu0 0.0
    %71 = vmatpush1.xpose.msra.mxu0 0.0
    %72 = vmatprep.subr.mxu0 0.0
    %73 = vmatpush1.xpose.msra.mxu0 0.0
    %74 = vmatprep.subr.mxu0 0.0
    %75 = vmatpush1.xpose.msra.mxu0 0.0
    %76 = vmatprep.subr.mxu0 0.0
    %77 = vmatpush1.xpose.msra.mxu0 %v44
    %78 = vmatprep.subr.mxu0 0.0
    %79 = vmatpush2.xpose.msra.mxu0 0.0
    %80 = vmatprep.subr.mxu0 0.0
    %81 = vmatpush2.xpose.msra.mxu0 0.0
    %82 = vmatprep.subr.mxu0 0.0
    %83 = vmatpush2.xpose.msra.mxu0 0.0
    %84 = vmatprep.subr.mxu0 0.0
    %85 = vmatpush2.xpose.msra.mxu0 0.0
    %86 = vmatprep.subr.mxu0 0.0
    %87 = vmatpush2.xpose.msra.mxu0 0.0
    %88 = vmatprep.subr.mxu0 0.0
    %89 = vmatpush2.xpose.msra.mxu0 0.0
    %90 = vmatprep.subr.mxu0 0.0
    %91 = vmatpush2.xpose.msra.mxu0 0.0
    %92 = vmatprep.subr.mxu0 0.0
    %93 = vmatpush2.xpose.msra.mxu0 0.0
    %94 = vmatprep.subr.mxu0 0.0
    %95 = vmatpush2.xpose.msra.mxu0 0.0
    %96 = vmatprep.subr.mxu0 0.0
    %97 = vmatpush2.xpose.msra.mxu0 0.0
    %98 = vmatprep.subr.mxu0 0.0
    %99 = vmatpush2.xpose.msra.mxu0 0.0
    %100 = vmatprep.subr.mxu0 0.0
    %101 = vmatpush2.xpose.msra.mxu0 0.0
    %102 = vmatprep.subr.mxu0 0.0
    %103 = vmatpush2.xpose.msra.mxu0 0.0
    %104 = vmatprep.subr.mxu0 0.0
    %105 = vmatpush2.xpose.msra.mxu0 0.0
    %106 = vmatprep.subr.mxu0 0.0
    %107 = vmatpush2.xpose.msra.mxu0 0.0
    %108 = vmatprep.subr.mxu0 0.0
    %109 = vmatpush2.xpose.msra.mxu0 0.0
    %110 = vmatprep.mubr.f32.mxu0 0.0
    %111 = vmatmul.mubr.f32.gmra.mxu0 %v41
    %v112 = vpop.f32.mrf.mxu0
    %v113 = vadd.f32 0.0, %v112
    %v114 = vpop.f32.mrf.mxu0
    %115 = vdwg.mxu0
    %vm116 = vcmask 60416
    %v117 = vsel %vm116, %v113, -inf
    %118 = vmax.xlane.f32.xlu0 %v117
    %v119 = vpop.xlane.xlu0 %118
    %v120 = vsub.f32 %v113, %v119
    %v121 = vmul.f32 %v120, 1.442695
    %v122 = vpow.pop %v121
    %v123 = vsel %vm116, %v122, 0.0
    %124 = vadd.xlane.f32.xlu0 %v123
    %v125 = vpop.xlane.xlu0 %124
    %v126 = vrcp.pop %v125
    %v127 = vmul.f32 %v122, %v126
    %v128 = vlaneseq
    %v129 = vand.u32 %v128, 127
    %v130 = vsel %vm116, %v127, -inf
    %131 = vmax.xlane.f32.xlu0 %v130
    %v132 = vpop.xlane.xlu0 %131
    %vm133 = vcmp.eq.f32.partialorder %v127, %v132
    %v134 = vsel %vm133, %v129, 8
    %v135 = vsel %vm116, %v134, 2147483647
    %v136 = vand.u32 %v135, 65535
    %v137 = vshra.s32 %v135, 16
    %v138 = vcvt.s32.f32 %v136
    %v139 = vcvt.s32.f32 %v137
    %140 = vmin.xlane.f32.xlu0 %v139
    %v141 = vpop.xlane.xlu0 %140
    %vm142 = vcmp.eq.f32.partialorder %v139, %v141
    %v143 = vsel %vm142, %v138, inf
    %144 = vmin.xlane.f32.xlu0 %v143
    %v145 = vpop.xlane.xlu0 %144
    %v146 = vcvt.f32.s32 %v145
    %v147 = vcvt.f32.s32 %v141
    %v148 = vshll.u32 %v147, 16
    %v149 = vadd.s32 %v148, %v146
    %vm150 = vcmp.eq.s32.totalorder %v129, %v149
    %v151 = vsel %vm150, -inf, %v127
    %v152 = vsel %vm116, %v151, -inf
    %153 = vmax.xlane.f32.xlu0 %v152
    %v154 = vpop.xlane.xlu0 %153
    %vm155 = vcmp.eq.f32.partialorder %v151, %v154
    %v156 = vsel %vm155, %v129, 8
    %v157 = vsel %vm116, %v156, 2147483647
    %v158 = vand.u32 %v157, 65535
    %v159 = vshra.s32 %v157, 16
    %v160 = vcvt.s32.f32 %v158
    %v161 = vcvt.s32.f32 %v159
    %162 = vmin.xlane.f32.xlu0 %v161
    %v163 = vpop.xlane.xlu0 %162
    %vm164 = vcmp.eq.f32.partialorder %v161, %v163
    %v165 = vsel %vm164, %v160, inf
    %166 = vmin.xlane.f32.xlu0 %v165
    %v167 = vpop.xlane.xlu0 %166
    %v168 = vcvt.f32.s32 %v167
    %v169 = vcvt.f32.s32 %v163
    %v170 = vshll.u32 %v169, 16
    %v171 = vadd.s32 %v170, %v168
    %vm172 = vcmask 7168
    %v173 = vsel %vm172, %v132, %v154
    %vm174 = vcmask 11264
    %175 = vst.msk [vmem:[%s2] sm:$0xf] %vm174, %v173
    %v176 = vsel %vm172, %v149, %v171
    %177 = vst.msk [vmem:[%s3] sm:$0xf] %vm174, %v176
    // Predicated region
    $region18: #{tpu_custom_call.1} parent=1 // pred_check
      _
    $region19: #{tpu_custom_call.1} parent=1 // pred_check_branch
      %179 = sbr.rel (0) target = $region21
    $region20: #{tpu_custom_call.1} parent=1 // pred_region
      _
    $region21: #{tpu_custom_call.1} parent=1 // pred_fallthru
      _
    // Predicated region
    $region22: #{tpu_custom_call.1} parent=1 // pred_check
      _
    $region23: #{tpu_custom_call.1} parent=1 // pred_check_branch
      %181 = sbr.rel (0) target = $region25
    $region24: #{tpu_custom_call.1} parent=1 // pred_region
      _
    $region25: #{tpu_custom_call.1} parent=1 // pred_fallthru
      _
    // Predicated region
    $region26: #{tpu_custom_call.1} parent=1 // pred_check
      _
    $region27: #{tpu_custom_call.1} parent=1 // pred_check_branch
      %183 = sbr.rel (0) target = $region29
    $region28: #{tpu_custom_call.1} parent=1 // pred_region
      _
    $region29: #{tpu_custom_call.1} parent=1 // pred_fallthru
      _
    // Predicated region
    $region30: #{tpu_custom_call.1} parent=1 // pred_check
      _
    $region31: #{tpu_custom_call.1} parent=1 // pred_check_branch
      %185 = sbr.rel (0) target = $region33
    $region32: #{tpu_custom_call.1} parent=1 // pred_region
      _
    $region33: #{tpu_custom_call.1} parent=1 // pred_fallthru
      _
    %186 = vsyncpa [#allocation3], 1
    %187 = vsyncpa [#allocation5], 1

</llo_original>
